<compile_context>
chip_gen: v7x
topology: tpu7x:2x2x1
jax: 0.10.0
libtpu: 0.0.40
codegen_flags: <defaults>
</compile_context>

<pallas_src>
import jax
import jax.numpy as jnp
from jax.experimental import pallas as pl
from jax.experimental.pallas import tpu as pltpu

LANE = 128      # lane width of a vreg
SUBLANE = 8     # sublane count of a vreg


def _round_up(x, m):
    return (x + m - 1) // m * m


# ----------------------------------------------------------------------------- kernel

def _rnn_step_kernel(ids_ref, h_ref, c_ref, emb_ref, w_ref, b_ref, fcw_ref, fcb_ref,
                     logits_ref, h_out_ref, c_out_ref):
    num_layers, bp, hp = h_ref.shape          # (L, Bp, Hp)
    vp = emb_ref.shape[0]                     # padded vocab

    # ---- Embedding lookup inside the kernel: one-hot (Bp, Vp) @ (Vp, Hp) on the MXU.
    ids = ids_ref[...]                                             # (Bp, 1) int32
    token_iota = jax.lax.broadcasted_iota(jnp.int32, (bp, vp), 1)  # (Bp, Vp)
    one_hot = (token_iota == ids).astype(jnp.float32)              # exact selection
    x = jnp.dot(one_hot, emb_ref[...], preferred_element_type=jnp.float32)  # (Bp, Hp)

    # ---- Static loop over LSTM layers (num_layers is small and fixed).
    for layer in range(num_layers):
        h_prev = h_ref[layer]                 # (Bp, Hp)
        c_prev = c_ref[layer]                 # (Bp, Hp)

        # Fused gate matmul: [x, h_prev] @ W_fused + (b_ih + b_hh)   -> (Bp, 4*Hp)
        z = jnp.concatenate([x, h_prev], axis=-1)                   # (Bp, 2*Hp)
        gates = (jnp.dot(z, w_ref[layer], preferred_element_type=jnp.float32)
                 + b_ref[layer])

        # 128-lane-aligned gate slabs -> free vreg views, no lane shuffles.
        i_g = jax.nn.sigmoid(gates[:, 0 * hp:1 * hp])
        f_g = jax.nn.sigmoid(gates[:, 1 * hp:2 * hp])
        g_g = jnp.tanh(gates[:, 2 * hp:3 * hp])
        o_g = jax.nn.sigmoid(gates[:, 3 * hp:4 * hp])

        c_new = f_g * c_prev + i_g * g_g
        h_new = o_g * jnp.tanh(c_new)

        # Aliased with the inputs; each slot is read above before being written here.
        h_out_ref[layer] = h_new.astype(h_out_ref.dtype)
        c_out_ref[layer] = c_new.astype(c_out_ref.dtype)

        x = h_new                             # input to the next layer

    # ---- Final linear: logits = top_h @ fc_W^T + fc_b  (lane-dense 128-wide output).
    logits_ref[...] = (
        jnp.dot(x, fcw_ref[...], preferred_element_type=jnp.float32) + fcb_ref[...]
    ).astype(logits_ref.dtype)


@jax.jit
def _rnn_step_pallas(ids_pad, hidden, cell, emb, w, b, fcw, fcb):
    num_layers, bp, hp = hidden.shape
    op = fcw.shape[1]
    vmem = pl.BlockSpec(memory_space=pltpu.MemorySpace.VMEM)
    return pl.pallas_call(
        _rnn_step_kernel,
        out_shape=(
            jax.ShapeDtypeStruct((bp, op), jnp.float32),                 # logits (padded)
            jax.ShapeDtypeStruct((num_layers, bp, hp), jnp.float32),     # new hidden
            jax.ShapeDtypeStruct((num_layers, bp, hp), jnp.float32),     # new cell
        ),
        in_specs=[vmem] * 8,
        out_specs=(vmem, vmem, vmem),
        # hidden -> new hidden, cell -> new cell (safe: read-before-write per layer).
        input_output_aliases={1: 1, 2: 2},
    )(ids_pad, hidden, cell, emb, w, b, fcw, fcb)


# ----------------------------------------------------------------------------- glue

def rnn_forward(kparams, x_ids, hidden, cell, *, output_size):
    """One forward step: token ids (B,) + padded (h, c) -> (logits (B,O), (h, c))."""
    batch = x_ids.shape[0]
    bp = hidden.shape[1]
    ids_pad = jnp.zeros((bp, 1), jnp.int32).at[:batch, 0].set(x_ids.astype(jnp.int32))
    logits_pad, new_h, new_c = _rnn_step_pallas(
        ids_pad, hidden, cell,
        kparams["emb"], kparams["w"], kparams["b"], kparams["fcw"], kparams["fcb"])
    return logits_pad[:batch, :output_size], (new_h, new_c)


def init_hidden(num_layers, batch, hidden_size):
    """Padded zero state (carried across steps; padding lanes stay zero)."""
    bp = _round_up(batch, SUBLANE)
    hp = _round_up(hidden_size, LANE)
    zeros = jnp.zeros((num_layers, bp, hp), jnp.float32)
    return zeros, zeros


def pack_params(raw):
    """Host-side packing: fuse W_ih/W_hh, pre-sum biases, lane-pad everything."""
    vocab, hidden_size = raw["embed"].shape
    num_layers = raw["w_ih"].shape[0]
    output_size = raw["fc_w"].shape[0]
    h, hp = hidden_size, _round_up(hidden_size, LANE)
    vp = _round_up(vocab, LANE)
    op = _round_up(output_size, LANE)

    emb = jnp.zeros((vp, hp), jnp.float32).at[:vocab, :h].set(raw["embed"])

    # W_fused: rows [0:H] take x, rows [Hp:Hp+H] take h_prev; gate g lives in
    # lanes [g*Hp : g*Hp + H].  Everything else is zero (keeps padding lanes inert).
    w = jnp.zeros((num_layers, 2 * hp, 4 * hp), jnp.float32)
    b = jnp.zeros((num_layers, 1, 4 * hp), jnp.float32)
    for g in range(4):  # PyTorch gate order [i, f, g, o]
        wih_g = jnp.swapaxes(raw["w_ih"][:, g * h:(g + 1) * h, :], 1, 2)  # (L, H, H)
        whh_g = jnp.swapaxes(raw["w_hh"][:, g * h:(g + 1) * h, :], 1, 2)  # (L, H, H)
        w = w.at[:, 0:h, g * hp:g * hp + h].set(wih_g)
        w = w.at[:, hp:hp + h, g * hp:g * hp + h].set(whh_g)
        b = b.at[:, 0, g * hp:g * hp + h].set(
            raw["b_ih"][:, g * h:(g + 1) * h] + raw["b_hh"][:, g * h:(g + 1) * h])

    fcw = jnp.zeros((hp, op), jnp.float32).at[:h, :output_size].set(raw["fc_w"].T)
    fcb = jnp.zeros((1, op), jnp.float32).at[0, :output_size].set(raw["fc_b"])
    return {"emb": emb, "w": w, "b": b, "fcw": fcw, "fcb": fcb}


def init_params(key, input_size, hidden_size, num_layers, output_size):
    """Deterministic synthetic parameters in PyTorch layout / scale."""
    v, h, l, o = input_size, hidden_size, num_layers, output_size
    keys = jax.random.split(key, 7)
    bound = hidden_size ** -0.5
    return {
        "embed": jax.random.normal(keys[0], (v, h), jnp.float32),
        "w_ih": jax.random.uniform(keys[1], (l, 4 * h, h), jnp.float32, -bound, bound),
        "w_hh": jax.random.uniform(keys[2], (l, 4 * h, h), jnp.float32, -bound, bound),
        "b_ih": jax.random.uniform(keys[3], (l, 4 * h), jnp.float32, -bound, bound),
        "b_hh": jax.random.uniform(keys[4], (l, 4 * h), jnp.float32, -bound, bound),
        "fc_w": jax.random.uniform(keys[5], (o, h), jnp.float32, -bound, bound),
        "fc_b": jax.random.uniform(keys[6], (o,), jnp.float32, -bound, bound),
    }


def _reference_forward(raw, x_ids, hidden, cell):
    """Pure-JAX reference mirroring PyTorch nn.LSTM semantics (seq_len = 1)."""
    h_dim = raw["w_ih"].shape[2]
    x = jnp.take(raw["embed"], x_ids, axis=0)
    new_h, new_c = [], []
    for layer in range(raw["w_ih"].shape[0]):
        gates = (x @ raw["w_ih"][layer].T + raw["b_ih"][layer]
                 + hidden[layer] @ raw["w_hh"][layer].T + raw["b_hh"][layer])
        i_g = jax.nn.sigmoid(gates[:, 0 * h_dim:1 * h_dim])
        f_g = jax.nn.sigmoid(gates[:, 1 * h_dim:2 * h_dim])
        g_g = jnp.tanh(gates[:, 2 * h_dim:3 * h_dim])
        o_g = jax.nn.sigmoid(gates[:, 3 * h_dim:4 * h_dim])
        c_new = f_g * cell[layer] + i_g * g_g
        h_new = o_g * jnp.tanh(c_new)
        new_h.append(h_new)
        new_c.append(c_new)
        x = h_new
    logits = x @ raw["fc_w"].T + raw["fc_b"]
    return logits, (jnp.stack(new_h), jnp.stack(new_c))


# ----------------------------------------------------------------------------- demo

if __name__ == "__main__":
    input_size = 16      # vocab size (e.g. character set)
    hidden_size = 32
    num_layers = 2
    output_size = 16
    batch = 4

    key = jax.random.PRNGKey(0)
    pkey, k1, k2 = jax.random.split(key, 3)
    raw = init_params(pkey, input_size, hidden_size, num_layers, output_size)
    kparams = pack_params(raw)

    # Padded, kernel-carried recurrent state (equivalent of init_hidden).
    hidden, cell = init_hidden(num_layers, batch, hidden_size)
    ref_h = jnp.zeros((num_layers, batch, hidden_size), jnp.float32)
    ref_c = jnp.zeros_like(ref_h)

    # Two steps to also exercise the recurrent state carry / aliasing.
    for step_key in (k1, k2):
        x_ids = jax.random.randint(step_key, (batch,), 0, input_size, dtype=jnp.int32)

        logits, (hidden, cell) = rnn_forward(kparams, x_ids, hidden, cell,
                                             output_size=output_size)
        jax.block_until_ready((logits, hidden, cell))

        ref_logits, (ref_h, ref_c) = _reference_forward(raw, x_ids, ref_h, ref_c)
        assert jnp.allclose(logits, ref_logits, atol=1e-4), "logits mismatch"
        assert jnp.allclose(hidden[:, :batch, :hidden_size], ref_h, atol=1e-4), "hidden mismatch"
        assert jnp.allclose(cell[:, :batch, :hidden_size], ref_c, atol=1e-4), "cell mismatch"

    print("KERNEL_OK")
</pallas_src>

<mosaic_0001>
module attributes {stable_mosaic.version = 11 : i64} {
  func.func @_rnn_step_kernel(%arg0: memref<8x1xi32, #tpu.memory_space<vmem>>, %arg1: memref<2x8x128xf32, #tpu.memory_space<vmem>>, %arg2: memref<2x8x128xf32, #tpu.memory_space<vmem>>, %arg3: memref<128x128xf32, #tpu.memory_space<vmem>>, %arg4: memref<2x256x512xf32, #tpu.memory_space<vmem>>, %arg5: memref<2x1x512xf32, #tpu.memory_space<vmem>>, %arg6: memref<128x128xf32, #tpu.memory_space<vmem>>, %arg7: memref<1x128xf32, #tpu.memory_space<vmem>>, %arg8: memref<8x128xf32, #tpu.memory_space<vmem>>, %arg9: memref<2x8x128xf32, #tpu.memory_space<vmem>>, %arg10: memref<2x8x128xf32, #tpu.memory_space<vmem>>) attributes {dimension_semantics = [], scalar_prefetch = 0 : i64, scratch_operands = 0 : i64, tpu.core_type = #tpu.core_type<tc>} {
    %c0 = arith.constant 0 : index
    %c0_0 = arith.constant 0 : index
    %0 = vector.load %arg0[%c0, %c0_0] : memref<8x1xi32, #tpu.memory_space<vmem>>, vector<8x1xi32>
    %1 = tpu.iota {dimensions = array<i32: 1>} : vector<8x128xi32>
    %2 = vector.broadcast %0 : vector<8x1xi32> to vector<8x128xi32>
    %3 = arith.cmpi eq, %1, %2 : vector<8x128xi32>
    %4 = arith.extui %3 : vector<8x128xi1> to vector<8x128xi32>
    %5 = arith.sitofp %4 : vector<8x128xi32> to vector<8x128xf32>
    %c0_1 = arith.constant 0 : index
    %c0_2 = arith.constant 0 : index
    %6 = vector.load %arg3[%c0_1, %c0_2] : memref<128x128xf32, #tpu.memory_space<vmem>>, vector<128x128xf32>
    %cst = arith.constant dense<0.000000e+00> : vector<8x128xf32>
    %7 = tpu.matmul %5, %6, %cst {dimension_numbers = #tpu.dot_dimension_numbers<[1], [0], [0], [1], [0, 0, 1, 1], [], []>} : vector<8x128xf32>, vector<128x128xf32>, vector<8x128xf32> -> vector<8x128xf32>
    %c0_3 = arith.constant 0 : index
    %c0_4 = arith.constant 0 : index
    %c0_5 = arith.constant 0 : index
    %8 = vector.load %arg1[%c0_3, %c0_4, %c0_5] : memref<2x8x128xf32, #tpu.memory_space<vmem>>, vector<1x8x128xf32>
    %9 = vector.shape_cast %8 : vector<1x8x128xf32> to vector<8x128xf32>
    %c0_6 = arith.constant 0 : index
    %c0_7 = arith.constant 0 : index
    %c0_8 = arith.constant 0 : index
    %10 = vector.load %arg2[%c0_6, %c0_7, %c0_8] : memref<2x8x128xf32, #tpu.memory_space<vmem>>, vector<1x8x128xf32>
    %11 = vector.shape_cast %10 : vector<1x8x128xf32> to vector<8x128xf32>
    %12 = tpu.concatenate %7, %9 in 1 : vector<8x128xf32>, vector<8x128xf32> -> vector<8x256xf32>
    %c0_9 = arith.constant 0 : index
    %c0_10 = arith.constant 0 : index
    %c0_11 = arith.constant 0 : index
    %13 = vector.load %arg4[%c0_9, %c0_10, %c0_11] : memref<2x256x512xf32, #tpu.memory_space<vmem>>, vector<1x256x512xf32>
    %14 = vector.shape_cast %13 : vector<1x256x512xf32> to vector<256x512xf32>
    %cst_12 = arith.constant dense<0.000000e+00> : vector<8x512xf32>
    %15 = tpu.matmul %12, %14, %cst_12 {dimension_numbers = #tpu.dot_dimension_numbers<[1], [0], [0], [1], [0, 0, 1, 1], [], []>} : vector<8x256xf32>, vector<256x512xf32>, vector<8x512xf32> -> vector<8x512xf32>
    %c0_13 = arith.constant 0 : index
    %c0_14 = arith.constant 0 : index
    %c0_15 = arith.constant 0 : index
    %16 = vector.load %arg5[%c0_13, %c0_14, %c0_15] : memref<2x1x512xf32, #tpu.memory_space<vmem>>, vector<1x1x512xf32>
    %17 = vector.shape_cast %16 : vector<1x1x512xf32> to vector<1x512xf32>
    %18 = vector.broadcast %17 : vector<1x512xf32> to vector<8x512xf32>
    %19 = arith.addf %15, %18 : vector<8x512xf32>
    %20 = vector.extract_strided_slice %19 {offsets = [0, 0], sizes = [8, 128], strides = [1, 1]} : vector<8x512xf32> to vector<8x128xf32>
    %21 = arith.negf %20 : vector<8x128xf32>
    %22 = math.exp %21 : vector<8x128xf32>
    %cst_16 = arith.constant 1.000000e+00 : f32
    %23 = vector.broadcast %cst_16 : f32 to vector<8x128xf32>
    %24 = arith.addf %23, %22 : vector<8x128xf32>
    %25 = arith.divf %23, %24 : vector<8x128xf32>
    %26 = vector.extract_strided_slice %19 {offsets = [0, 128], sizes = [8, 128], strides = [1, 1]} : vector<8x512xf32> to vector<8x128xf32>
    %27 = arith.negf %26 : vector<8x128xf32>
    %28 = math.exp %27 : vector<8x128xf32>
    %cst_17 = arith.constant 1.000000e+00 : f32
    %29 = vector.broadcast %cst_17 : f32 to vector<8x128xf32>
    %30 = arith.addf %29, %28 : vector<8x128xf32>
    %31 = arith.divf %29, %30 : vector<8x128xf32>
    %32 = vector.extract_strided_slice %19 {offsets = [0, 256], sizes = [8, 128], strides = [1, 1]} : vector<8x512xf32> to vector<8x128xf32>
    %33 = math.tanh %32 : vector<8x128xf32>
    %34 = vector.extract_strided_slice %19 {offsets = [0, 384], sizes = [8, 128], strides = [1, 1]} : vector<8x512xf32> to vector<8x128xf32>
    %35 = arith.negf %34 : vector<8x128xf32>
    %36 = math.exp %35 : vector<8x128xf32>
    %cst_18 = arith.constant 1.000000e+00 : f32
    %37 = vector.broadcast %cst_18 : f32 to vector<8x128xf32>
    %38 = arith.addf %37, %36 : vector<8x128xf32>
    %39 = arith.divf %37, %38 : vector<8x128xf32>
    %40 = arith.mulf %31, %11 : vector<8x128xf32>
    %41 = arith.mulf %25, %33 : vector<8x128xf32>
    %42 = arith.addf %40, %41 : vector<8x128xf32>
    %43 = math.tanh %42 : vector<8x128xf32>
    %44 = arith.mulf %39, %43 : vector<8x128xf32>
    %c0_19 = arith.constant 0 : index
    %c0_20 = arith.constant 0 : index
    %c0_21 = arith.constant 0 : index
    %45 = vector.load %arg9[%c0_19, %c0_20, %c0_21] : memref<2x8x128xf32, #tpu.memory_space<vmem>>, vector<1x8x128xf32>
    %46 = vector.shape_cast %45 : vector<1x8x128xf32> to vector<8x128xf32>
    %47 = vector.shape_cast %44 : vector<8x128xf32> to vector<1x8x128xf32>
    tpu.vector_store %arg9[%c0_19, %c0_20, %c0_21], %47 {strides = array<i32>} : memref<2x8x128xf32, #tpu.memory_space<vmem>>, vector<1x8x128xf32>,
    %c0_22 = arith.constant 0 : index
    %c0_23 = arith.constant 0 : index
    %c0_24 = arith.constant 0 : index
    %48 = vector.load %arg10[%c0_22, %c0_23, %c0_24] : memref<2x8x128xf32, #tpu.memory_space<vmem>>, vector<1x8x128xf32>
    %49 = vector.shape_cast %48 : vector<1x8x128xf32> to vector<8x128xf32>
    %50 = vector.shape_cast %42 : vector<8x128xf32> to vector<1x8x128xf32>
    tpu.vector_store %arg10[%c0_22, %c0_23, %c0_24], %50 {strides = array<i32>} : memref<2x8x128xf32, #tpu.memory_space<vmem>>, vector<1x8x128xf32>,
    %c1 = arith.constant 1 : index
    %c0_25 = arith.constant 0 : index
    %c0_26 = arith.constant 0 : index
    %51 = vector.load %arg1[%c1, %c0_25, %c0_26] : memref<2x8x128xf32, #tpu.memory_space<vmem>>, vector<1x8x128xf32>
    %52 = vector.shape_cast %51 : vector<1x8x128xf32> to vector<8x128xf32>
    %c1_27 = arith.constant 1 : index
    %c0_28 = arith.constant 0 : index
    %c0_29 = arith.constant 0 : index
    %53 = vector.load %arg2[%c1_27, %c0_28, %c0_29] : memref<2x8x128xf32, #tpu.memory_space<vmem>>, vector<1x8x128xf32>
    %54 = vector.shape_cast %53 : vector<1x8x128xf32> to vector<8x128xf32>
    %55 = tpu.concatenate %44, %52 in 1 : vector<8x128xf32>, vector<8x128xf32> -> vector<8x256xf32>
    %c1_30 = arith.constant 1 : index
    %c0_31 = arith.constant 0 : index
    %c0_32 = arith.constant 0 : index
    %56 = vector.load %arg4[%c1_30, %c0_31, %c0_32] : memref<2x256x512xf32, #tpu.memory_space<vmem>>, vector<1x256x512xf32>
    %57 = vector.shape_cast %56 : vector<1x256x512xf32> to vector<256x512xf32>
    %cst_33 = arith.constant dense<0.000000e+00> : vector<8x512xf32>
    %58 = tpu.matmul %55, %57, %cst_33 {dimension_numbers = #tpu.dot_dimension_numbers<[1], [0], [0], [1], [0, 0, 1, 1], [], []>} : vector<8x256xf32>, vector<256x512xf32>, vector<8x512xf32> -> vector<8x512xf32>
    %c1_34 = arith.constant 1 : index
    %c0_35 = arith.constant 0 : index
    %c0_36 = arith.constant 0 : index
    %59 = vector.load %arg5[%c1_34, %c0_35, %c0_36] : memref<2x1x512xf32, #tpu.memory_space<vmem>>, vector<1x1x512xf32>
    %60 = vector.shape_cast %59 : vector<1x1x512xf32> to vector<1x512xf32>
    %61 = vector.broadcast %60 : vector<1x512xf32> to vector<8x512xf32>
    %62 = arith.addf %58, %61 : vector<8x512xf32>
    %63 = vector.extract_strided_slice %62 {offsets = [0, 0], sizes = [8, 128], strides = [1, 1]} : vector<8x512xf32> to vector<8x128xf32>
    %64 = arith.negf %63 : vector<8x128xf32>
    %65 = math.exp %64 : vector<8x128xf32>
    %cst_37 = arith.constant 1.000000e+00 : f32
    %66 = vector.broadcast %cst_37 : f32 to vector<8x128xf32>
    %67 = arith.addf %66, %65 : vector<8x128xf32>
    %68 = arith.divf %66, %67 : vector<8x128xf32>
    %69 = vector.extract_strided_slice %62 {offsets = [0, 128], sizes = [8, 128], strides = [1, 1]} : vector<8x512xf32> to vector<8x128xf32>
    %70 = arith.negf %69 : vector<8x128xf32>
    %71 = math.exp %70 : vector<8x128xf32>
    %cst_38 = arith.constant 1.000000e+00 : f32
    %72 = vector.broadcast %cst_38 : f32 to vector<8x128xf32>
    %73 = arith.addf %72, %71 : vector<8x128xf32>
    %74 = arith.divf %72, %73 : vector<8x128xf32>
    %75 = vector.extract_strided_slice %62 {offsets = [0, 256], sizes = [8, 128], strides = [1, 1]} : vector<8x512xf32> to vector<8x128xf32>
    %76 = math.tanh %75 : vector<8x128xf32>
    %77 = vector.extract_strided_slice %62 {offsets = [0, 384], sizes = [8, 128], strides = [1, 1]} : vector<8x512xf32> to vector<8x128xf32>
    %78 = arith.negf %77 : vector<8x128xf32>
    %79 = math.exp %78 : vector<8x128xf32>
    %cst_39 = arith.constant 1.000000e+00 : f32
    %80 = vector.broadcast %cst_39 : f32 to vector<8x128xf32>
    %81 = arith.addf %80, %79 : vector<8x128xf32>
    %82 = arith.divf %80, %81 : vector<8x128xf32>
    %83 = arith.mulf %74, %54 : vector<8x128xf32>
    %84 = arith.mulf %68, %76 : vector<8x128xf32>
    %85 = arith.addf %83, %84 : vector<8x128xf32>
    %86 = math.tanh %85 : vector<8x128xf32>
    %87 = arith.mulf %82, %86 : vector<8x128xf32>
    %c1_40 = arith.constant 1 : index
    %c0_41 = arith.constant 0 : index
    %c0_42 = arith.constant 0 : index
    %88 = vector.load %arg9[%c1_40, %c0_41, %c0_42] : memref<2x8x128xf32, #tpu.memory_space<vmem>>, vector<1x8x128xf32>
    %89 = vector.shape_cast %88 : vector<1x8x128xf32> to vector<8x128xf32>
    %90 = vector.shape_cast %87 : vector<8x128xf32> to vector<1x8x128xf32>
    tpu.vector_store %arg9[%c1_40, %c0_41, %c0_42], %90 {strides = array<i32>} : memref<2x8x128xf32, #tpu.memory_space<vmem>>, vector<1x8x128xf32>,
    %c1_43 = arith.constant 1 : index
    %c0_44 = arith.constant 0 : index
    %c0_45 = arith.constant 0 : index
    %91 = vector.load %arg10[%c1_43, %c0_44, %c0_45] : memref<2x8x128xf32, #tpu.memory_space<vmem>>, vector<1x8x128xf32>
    %92 = vector.shape_cast %91 : vector<1x8x128xf32> to vector<8x128xf32>
    %93 = vector.shape_cast %85 : vector<8x128xf32> to vector<1x8x128xf32>
    tpu.vector_store %arg10[%c1_43, %c0_44, %c0_45], %93 {strides = array<i32>} : memref<2x8x128xf32, #tpu.memory_space<vmem>>, vector<1x8x128xf32>,
    %c0_46 = arith.constant 0 : index
    %c0_47 = arith.constant 0 : index
    %94 = vector.load %arg6[%c0_46, %c0_47] : memref<128x128xf32, #tpu.memory_space<vmem>>, vector<128x128xf32>
    %cst_48 = arith.constant dense<0.000000e+00> : vector<8x128xf32>
    %95 = tpu.matmul %87, %94, %cst_48 {dimension_numbers = #tpu.dot_dimension_numbers<[1], [0], [0], [1], [0, 0, 1, 1], [], []>} : vector<8x128xf32>, vector<128x128xf32>, vector<8x128xf32> -> vector<8x128xf32>
    %c0_49 = arith.constant 0 : index
    %c0_50 = arith.constant 0 : index
    %96 = vector.load %arg7[%c0_49, %c0_50] : memref<1x128xf32, #tpu.memory_space<vmem>>, vector<1x128xf32>
    %97 = vector.broadcast %96 : vector<1x128xf32> to vector<8x128xf32>
    %98 = arith.addf %95, %97 : vector<8x128xf32>
    %c0_51 = arith.constant 0 : index
    %c0_52 = arith.constant 0 : index
    %99 = vector.load %arg8[%c0_51, %c0_52] : memref<8x128xf32, #tpu.memory_space<vmem>>, vector<8x128xf32>
    tpu.vector_store %arg8[%c0_51, %c0_52], %98 {strides = array<i32>} : memref<8x128xf32, #tpu.memory_space<vmem>>, vector<8x128xf32>,
    return
  }
}

</mosaic_0001>

<llo_original>
// kernel: _rnn_step_pallas.1
$region0: #{_rnn_step_pallas.1}
  #allocation0 [shape = 'u32[]', space=smem, size = 0x4, offset = 0x4, fixed_abs, tag = 'smem constant byte address 0x4 - core index']
  #allocation1 [shape = 'u32[144,128]{1,0:T(1,128)}', space=vmem, size = 0x12000, scoped, tag = 'internal scratch']
  %s0 = inlined_call_operand.vmem [shape: s32[8,1], index: 0, kind: input, shape index: {}]
  %s1 = inlined_call_operand.hbm [shape: f32[2,8,128], index: 1, kind: input, shape index: {}, may-alias: {1,9}]
  %s2 = inlined_call_operand.hbm [shape: f32[2,8,128], index: 2, kind: input, shape index: {}, may-alias: {2,10}]
  %s3 = inlined_call_operand.hbm [shape: f32[128,128], index: 3, kind: input, shape index: {}]
  %s4 = inlined_call_operand.hbm [shape: f32[2,256,512], index: 4, kind: input, shape index: {}]
  %s5 = inlined_call_operand.vmem [shape: f32[2,1,512], index: 5, kind: input, shape index: {}]
  %s6 = inlined_call_operand.hbm [shape: f32[128,128], index: 6, kind: input, shape index: {}]
  %s7 = inlined_call_operand.vmem [shape: f32[1,128], index: 7, kind: input, shape index: {}]
  %s8 = inlined_call_operand.hbm [shape: f32[8,128], index: 8, kind: output, shape index: {0}]
  %s9 = inlined_call_operand.hbm [shape: f32[2,8,128], index: 9, kind: output, shape index: {1}, may-alias: {1,9}]
  %s10 = inlined_call_operand.hbm [shape: f32[2,8,128], index: 10, kind: output, shape index: {2}, may-alias: {2,10}]
  %11 = xla_tuple %s8, %s9, %s10
  %s12 = sld [smem:[#allocation0]]
  $region78: #{_rnn_step_pallas.1} parent=0
    _
  %s14 = ssub.s32 1, %s12
  %s15 = scalar_select 0, %s14, %s12
  $region1: #{_rnn_step_pallas.1} parent=0
    #allocation2 [shape = 'u8[8192]{0}', space=vmem, size = 0x2000, scoped, tag = 'input window, operand 1, single buffered']
    #allocation3 [shape = 's32[1]{0}', space=sflag, size = 0x4, scoped, tag = 'scoped memory for _rnn_step_pallas.1']
    #allocation4 [shape = 's32[1]{0}', space=sflag, size = 0x4, scoped, tag = 'scoped memory for _rnn_step_pallas.1']
    #allocation5 [shape = 'u8[8192]{0}', space=vmem, size = 0x2000, scoped, tag = 'input window, operand 2, single buffered']
    #allocation6 [shape = 's32[1]{0}', space=sflag, size = 0x4, scoped, tag = 'scoped memory for _rnn_step_pallas.1']
    #allocation7 [shape = 'u8[65536]{0}', space=vmem, size = 0x10000, scoped, tag = 'input window, operand 3, single buffered']
    #allocation8 [shape = 'u8[1048576]{0}', space=vmem, size = 0x100000, scoped, tag = 'input window, operand 4, single buffered']
    #allocation9 [shape = 's32[1]{0}', space=sflag, size = 0x4, scoped, tag = 'scoped memory for _rnn_step_pallas.1']
    #allocation10 [shape = 'u8[65536]{0}', space=vmem, size = 0x10000, scoped, tag = 'input window, operand 6, single buffered']
    #allocation11 [shape = 'u8[4096]{0}', space=vmem, size = 0x1000, scoped, tag = 'output window, operand 0, single buffered']
    #allocation12 [shape = 'u8[8192]{0}', space=vmem, size = 0x2000, scoped, tag = 'output window, operand 1, single buffered']
    #allocation13 [shape = 's32[1]{0}', space=sflag, size = 0x4, scoped, tag = 'scoped memory for _rnn_step_pallas.1']
    #allocation14 [shape = 'u8[8192]{0}', space=vmem, size = 0x2000, scoped, tag = 'output window, operand 2, single buffered']
    %16 = vsyncpa [#allocation3], 0
    %17 = vsyncpa [#allocation6], 0
    %18 = vsyncpa [#allocation9], 0
    %19 = vsyncpa [#allocation4], 0
    %20 = vsyncpa [#allocation13], 0
    // Predicated region
    $region2: #{_rnn_step_pallas.1} parent=1 // pred_check
      _
    $region3: #{_rnn_step_pallas.1} parent=1 // pred_check_branch
      %22 = sbr.rel (0) target = $region5
    $region4: #{_rnn_step_pallas.1} parent=1 // pred_region
      _
    $region5: #{_rnn_step_pallas.1} parent=1 // pred_fallthru
      _
    // Predicated region
    $region6: #{_rnn_step_pallas.1} parent=1 // pred_check
      _
    $region7: #{_rnn_step_pallas.1} parent=1 // pred_check_branch
      %24 = sbr.rel (0) target = $region9
    $region8: #{_rnn_step_pallas.1} parent=1 // pred_region
      %s26 = ssub.s32 256, 256
      %27 = vsyncadd [#allocation3], %s26
      %s28 = sshll.u32 [#allocation2], 4
      %s29 = int_to_ptr.vmem [resolvable:$true] %s28
      %34 = dma.hbm_to_vmem [thread:$0]  %s1, 256, %s29, [#allocation3], 128, 128, 8
    $region9: #{_rnn_step_pallas.1} parent=1 // pred_fallthru
      _
    // Predicated region
    $region10: #{_rnn_step_pallas.1} parent=1 // pred_check
      _
    $region11: #{_rnn_step_pallas.1} parent=1 // pred_check_branch
      %36 = sbr.rel (0) target = $region13
    $region12: #{_rnn_step_pallas.1} parent=1 // pred_region
      %s38 = ssub.s32 256, 256
      %39 = vsyncadd [#allocation6], %s38
      %s40 = sshll.u32 [#allocation5], 4
      %s41 = int_to_ptr.vmem [resolvable:$true] %s40
      %46 = dma.hbm_to_vmem [thread:$0]  %s2, 256, %s41, [#allocation6], 128, 128, 8
    $region13: #{_rnn_step_pallas.1} parent=1 // pred_fallthru
      _
    // Predicated region
    $region14: #{_rnn_step_pallas.1} parent=1 // pred_check
      _
    $region15: #{_rnn_step_pallas.1} parent=1 // pred_check_branch
      %48 = sbr.rel (0) target = $region17
    $region16: #{_rnn_step_pallas.1} parent=1 // pred_region
      %s50 = ssub.s32 2048, 2048
      %51 = vsyncadd [#allocation6], %s50
      %s52 = sshll.u32 [#allocation7], 4
      %s53 = int_to_ptr.vmem [resolvable:$true] %s52
      %58 = dma.hbm_to_vmem [thread:$0]  %s3, 2048, %s53, [#allocation6], 128, 128, 8
    $region17: #{_rnn_step_pallas.1} parent=1 // pred_fallthru
      _
    // Predicated region
    $region18: #{_rnn_step_pallas.1} parent=1 // pred_check
      _
    $region19: #{_rnn_step_pallas.1} parent=1 // pred_check_branch
      %60 = sbr.rel (0) target = $region21
    $region20: #{_rnn_step_pallas.1} parent=1 // pred_region
      %s62 = ssub.s32 32768, 32768
      %63 = vsyncadd [#allocation9], %s62
      %s64 = sshll.u32 [#allocation8], 4
      %s65 = int_to_ptr.vmem [resolvable:$true] %s64
      %70 = dma.hbm_to_vmem [thread:$0]  %s4, 32768, %s65, [#allocation9], 512, 512, 32
    $region21: #{_rnn_step_pallas.1} parent=1 // pred_fallthru
      _
    // Predicated region
    $region22: #{_rnn_step_pallas.1} parent=1 // pred_check
      _
    $region23: #{_rnn_step_pallas.1} parent=1 // pred_check_branch
      %72 = sbr.rel (0) target = $region25
    $region24: #{_rnn_step_pallas.1} parent=1 // pred_region
      _
    $region25: #{_rnn_step_pallas.1} parent=1 // pred_fallthru
      _
    // Predicated region
    $region26: #{_rnn_step_pallas.1} parent=1 // pred_check
      _
    $region27: #{_rnn_step_pallas.1} parent=1 // pred_check_branch
      %74 = sbr.rel (0) target = $region29
    $region28: #{_rnn_step_pallas.1} parent=1 // pred_region
      %s76 = ssub.s32 2048, 2048
      %77 = vsyncadd [#allocation9], %s76
      %s78 = sshll.u32 [#allocation10], 4
      %s79 = int_to_ptr.vmem [resolvable:$true] %s78
      %84 = dma.hbm_to_vmem [thread:$0]  %s6, 2048, %s79, [#allocation9], 128, 128, 8
    $region29: #{_rnn_step_pallas.1} parent=1 // pred_fallthru
      _
    // Predicated region
    $region30: #{_rnn_step_pallas.1} parent=1 // pred_check
      _
    $region31: #{_rnn_step_pallas.1} parent=1 // pred_check_branch
      %86 = sbr.rel (0) target = $region33
    $region32: #{_rnn_step_pallas.1} parent=1 // pred_region
      _
    $region33: #{_rnn_step_pallas.1} parent=1 // pred_fallthru
      _
    // Predicated region
    $region34: #{_rnn_step_pallas.1} parent=1 // pred_check
      _
    $region35: #{_rnn_step_pallas.1} parent=1 // pred_check_branch
      %88 = sbr.rel (0) target = $region37
    $region36: #{_rnn_step_pallas.1} parent=1 // pred_region
      %89 = dma.done [#allocation3], 256
    $region37: #{_rnn_step_pallas.1} parent=1 // pred_fallthru
      _
    // Predicated region
    $region38: #{_rnn_step_pallas.1} parent=1 // pred_check
      _
    $region39: #{_rnn_step_pallas.1} parent=1 // pred_check_branch
      %91 = sbr.rel (0) target = $region41
    $region40: #{_rnn_step_pallas.1} parent=1 // pred_region
      %92 = dma.done [#allocation6], 256
    $region41: #{_rnn_step_pallas.1} parent=1 // pred_fallthru
      _
    // Predicated region
    $region42: #{_rnn_step_pallas.1} parent=1 // pred_check
      _
    $region43: #{_rnn_step_pallas.1} parent=1 // pred_check_branch
      %94 = sbr.rel (0) target = $region45
    $region44: #{_rnn_step_pallas.1} parent=1 // pred_region
      %95 = dma.done [#allocation6], 2048
    $region45: #{_rnn_step_pallas.1} parent=1 // pred_fallthru
      _
    // Predicated region
    $region46: #{_rnn_step_pallas.1} parent=1 // pred_check
      _
    $region47: #{_rnn_step_pallas.1} parent=1 // pred_check_branch
      %97 = sbr.rel (0) target = $region49
    $region48: #{_rnn_step_pallas.1} parent=1 // pred_region
      %98 = dma.done [#allocation9], 32768
    $region49: #{_rnn_step_pallas.1} parent=1 // pred_fallthru
      _
    // Predicated region
    $region50: #{_rnn_step_pallas.1} parent=1 // pred_check
      _
    $region51: #{_rnn_step_pallas.1} parent=1 // pred_check_branch
      %100 = sbr.rel (0) target = $region53
    $region52: #{_rnn_step_pallas.1} parent=1 // pred_region
      %101 = dma.done [#allocation9], 2048
    $region53: #{_rnn_step_pallas.1} parent=1 // pred_fallthru
      _
    %v102 = vld [vmem:[%s0] sm:$0xff]
    %v103 = vlaneseq
    %v104 = vand.u32 %v103, 127
    %105 = vset.pattern.permute.xlu0 0
    %106 = vperm.xlu0 %105, %v102
    %v107 = vpop.permute.xlu0 %106
    %vm108 = vcmp.eq.s32.totalorder %v104, %v107
    %v109 = vsel %vm108, 1, 0
    %v110 = vcvt.s32.f32 %v109
    %v111 = vld [vmem:[#allocation7] sm:$0xff]
    %v112 = vld [vmem:[#allocation7 + $0x8] sm:$0xff]
    %v113 = vld [vmem:[#allocation7 + $0x10] sm:$0xff]
    %v114 = vld [vmem:[#allocation7 + $0x18] sm:$0xff]
    %v115 = vld [vmem:[#allocation7 + $0x20] sm:$0xff]
    %v116 = vld [vmem:[#allocation7 + $0x28] sm:$0xff]
    %v117 = vld [vmem:[#allocation7 + $0x30] sm:$0xff]
    %v118 = vld [vmem:[#allocation7 + $0x38] sm:$0xff]
    %v119 = vld [vmem:[#allocation7 + $0x40] sm:$0xff]
    %v120 = vld [vmem:[#allocation7 + $0x48] sm:$0xff]
    %v121 = vld [vmem:[#allocation7 + $0x50] sm:$0xff]
    %v122 = vld [vmem:[#allocation7 + $0x58] sm:$0xff]
    %v123 = vld [vmem:[#allocation7 + $0x60] sm:$0xff]
    %v124 = vld [vmem:[#allocation7 + $0x68] sm:$0xff]
    %v125 = vld [vmem:[#allocation7 + $0x70] sm:$0xff]
    %v126 = vld [vmem:[#allocation7 + $0x78] sm:$0xff]
    %127 = vmatprep.subr.mxu0 0.0
    %128 = vmatpush1.msra.mxu0 %v111
    %129 = vmatprep.subr.mxu0 0.0
    %130 = vmatpush1.msra.mxu0 %v112
    %131 = vmatprep.subr.mxu0 0.0
    %132 = vmatpush1.msra.mxu0 %v113
    %133 = vmatprep.subr.mxu0 0.0
    %134 = vmatpush1.msra.mxu0 %v114
    %135 = vmatprep.subr.mxu0 0.0
    %136 = vmatpush1.msra.mxu0 %v115
    %137 = vmatprep.subr.mxu0 0.0
    %138 = vmatpush1.msra.mxu0 %v116
    %139 = vmatprep.subr.mxu0 0.0
    %140 = vmatpush1.msra.mxu0 %v117
    %141 = vmatprep.subr.mxu0 0.0
    %142 = vmatpush1.msra.mxu0 %v118
    %143 = vmatprep.subr.mxu0 0.0
    %144 = vmatpush1.msra.mxu0 %v119
    %145 = vmatprep.subr.mxu0 0.0
    %146 = vmatpush1.msra.mxu0 %v120
    %147 = vmatprep.subr.mxu0 0.0
    %148 = vmatpush1.msra.mxu0 %v121
    %149 = vmatprep.subr.mxu0 0.0
    %150 = vmatpush1.msra.mxu0 %v122
    %151 = vmatprep.subr.mxu0 0.0
    %152 = vmatpush1.msra.mxu0 %v123
    %153 = vmatprep.subr.mxu0 0.0
    %154 = vmatpush1.msra.mxu0 %v124
    %155 = vmatprep.subr.mxu0 0.0
    %156 = vmatpush1.msra.mxu0 %v125
    %157 = vmatprep.subr.mxu0 0.0
    %158 = vmatpush1.msra.mxu0 %v126
    %159 = vmatprep.subr.mxu0 0.0
    %160 = vmatpush1.msra.mxu0 0.0
    %161 = vmatprep.subr.mxu0 0.0
    %162 = vmatpush1.msra.mxu0 0.0
    %163 = vmatprep.subr.mxu0 0.0
    %164 = vmatpush1.msra.mxu0 0.0
    %165 = vmatprep.subr.mxu0 0.0
    %166 = vmatpush1.msra.mxu0 0.0
    %167 = vmatprep.subr.mxu0 0.0
    %168 = vmatpush1.msra.mxu0 0.0
    %169 = vmatprep.subr.mxu0 0.0
    %170 = vmatpush1.msra.mxu0 0.0
    %171 = vmatprep.subr.mxu0 0.0
    %172 = vmatpush1.msra.mxu0 0.0
    %173 = vmatprep.subr.mxu0 0.0
    %174 = vmatpush1.msra.mxu0 0.0
    %175 = vmatprep.subr.mxu0 0.0
    %176 = vmatpush1.msra.mxu0 0.0
    %177 = vmatprep.subr.mxu0 0.0
    %178 = vmatpush1.msra.mxu0 0.0
    %179 = vmatprep.subr.mxu0 0.0
    %180 = vmatpush1.msra.mxu0 0.0
    %181 = vmatprep.subr.mxu0 0.0
    %182 = vmatpush1.msra.mxu0 0.0
    %183 = vmatprep.subr.mxu0 0.0
    %184 = vmatpush1.msra.mxu0 0.0
    %185 = vmatprep.subr.mxu0 0.0
    %186 = vmatpush1.msra.mxu0 0.0
    %187 = vmatprep.subr.mxu0 0.0
    %188 = vmatpush1.msra.mxu0 0.0
    %189 = vmatprep.subr.mxu0 0.0
    %190 = vmatpush1.msra.mxu0 0.0
    %191 = vmatprep.mubr.f32.mxu0 0.0
    %192 = vmatmul.mubr.f32.gmra.mrb[0].mxu0 %v110
    %v193 = vpop.f32.mrb[0].mxu0
    %v194 = vadd.f32 0.0, %v193
    %v195 = vpop.f32.mrb[0].mxu0
    %196 = vdwg.mxu0
    %v197 = vld [vmem:[#allocation2] sm:$0xff]
    %v198 = vld [vmem:[#allocation5] sm:$0xff]
    %v199 = vld [vmem:[#allocation8] sm:$0xff]
    %v200 = vld [vmem:[#allocation8 + $0x8] sm:$0xff]
    %v201 = vld [vmem:[#allocation8 + $0x10] sm:$0xff]
    %v202 = vld [vmem:[#allocation8 + $0x18] sm:$0xff]
    %v203 = vld [vmem:[#allocation8 + $0x20] sm:$0xff]
    %v204 = vld [vmem:[#allocation8 + $0x28] sm:$0xff]
    %v205 = vld [vmem:[#allocation8 + $0x30] sm:$0xff]
    %v206 = vld [vmem:[#allocation8 + $0x38] sm:$0xff]
    %v207 = vld [vmem:[#allocation8 + $0x40] sm:$0xff]
    %v208 = vld [vmem:[#allocation8 + $0x48] sm:$0xff]
    %v209 = vld [vmem:[#allocation8 + $0x50] sm:$0xff]
    %v210 = vld [vmem:[#allocation8 + $0x58] sm:$0xff]
    %v211 = vld [vmem:[#allocation8 + $0x60] sm:$0xff]
    %v212 = vld [vmem:[#allocation8 + $0x68] sm:$0xff]
    %v213 = vld [vmem:[#allocation8 + $0x70] sm:$0xff]
    %v214 = vld [vmem:[#allocation8 + $0x78] sm:$0xff]
    %v215 = vld [vmem:[#allocation8 + $0x80] sm:$0xff]
    %v216 = vld [vmem:[#allocation8 + $0x88] sm:$0xff]
    %v217 = vld [vmem:[#allocation8 + $0x90] sm:$0xff]
    %v218 = vld [vmem:[#allocation8 + $0x98] sm:$0xff]
    %v219 = vld [vmem:[#allocation8 + $0xa0] sm:$0xff]
    %v220 = vld [vmem:[#allocation8 + $0xa8] sm:$0xff]
    %v221 = vld [vmem:[#allocation8 + $0xb0] sm:$0xff]
    %v222 = vld [vmem:[#allocation8 + $0xb8] sm:$0xff]
    %v223 = vld [vmem:[#allocation8 + $0xc0] sm:$0xff]
    %v224 = vld [vmem:[#allocation8 + $0xc8] sm:$0xff]
    %v225 = vld [vmem:[#allocation8 + $0xd0] sm:$0xff]
    %v226 = vld [vmem:[#allocation8 + $0xd8] sm:$0xff]
    %v227 = vld [vmem:[#allocation8 + $0xe0] sm:$0xff]
    %v228 = vld [vmem:[#allocation8 + $0xe8] sm:$0xff]
    %v229 = vld [vmem:[#allocation8 + $0xf0] sm:$0xff]
    %v230 = vld [vmem:[#allocation8 + $0xf8] sm:$0xff]
    %v231 = vld [vmem:[#allocation8 + $0x100] sm:$0xff]
    %v232 = vld [vmem:[#allocation8 + $0x108] sm:$0xff]
    %v233 = vld [vmem:[#allocation8 + $0x110] sm:$0xff]
    %v234 = vld [vmem:[#allocation8 + $0x118] sm:$0xff]
    %v235 = vld [vmem:[#allocation8 + $0x120] sm:$0xff]
    %v236 = vld [vmem:[#allocation8 + $0x128] sm:$0xff]
    %v237 = vld [vmem:[#allocation8 + $0x130] sm:$0xff]
    %v238 = vld [vmem:[#allocation8 + $0x138] sm:$0xff]
    %v239 = vld [vmem:[#allocation8 + $0x140] sm:$0xff]
    %v240 = vld [vmem:[#allocation8 + $0x148] sm:$0xff]
    %v241 = vld [vmem:[#allocation8 + $0x150] sm:$0xff]
    %v242 = vld [vmem:[#allocation8 + $0x158] sm:$0xff]
    %v243 = vld [vmem:[#allocation8 + $0x160] sm:$0xff]
    %v244 = vld [vmem:[#allocation8 + $0x168] sm:$0xff]
    %v245 = vld [vmem:[#allocation8 + $0x170] sm:$0xff]
    %v246 = vld [vmem:[#allocation8 + $0x178] sm:$0xff]
    %v247 = vld [vmem:[#allocation8 + $0x180] sm:$0xff]
    %v248 = vld [vmem:[#allocation8 + $0x188] sm:$0xff]
    %v249 = vld [vmem:[#allocation8 + $0x190] sm:$0xff]
    %v250 = vld [vmem:[#allocation8 + $0x198] sm:$0xff]
    %v251 = vld [vmem:[#allocation8 + $0x1a0] sm:$0xff]
    %v252 = vld [vmem:[#allocation8 + $0x1a8] sm:$0xff]
    %v253 = vld [vmem:[#allocation8 + $0x1b0] sm:$0xff]
    %v254 = vld [vmem:[#allocation8 + $0x1b8] sm:$0xff]
    %v255 = vld [vmem:[#allocation8 + $0x1c0] sm:$0xff]
    %v256 = vld [vmem:[#allocation8 + $0x1c8] sm:$0xff]
    %v257 = vld [vmem:[#allocation8 + $0x1d0] sm:$0xff]
    %v258 = vld [vmem:[#allocation8 + $0x1d8] sm:$0xff]
    %v259 = vld [vmem:[#allocation8 + $0x1e0] sm:$0xff]
    %v260 = vld [vmem:[#allocation8 + $0x1e8] sm:$0xff]
    %v261 = vld [vmem:[#allocation8 + $0x1f0] sm:$0xff]
    %v262 = vld [vmem:[#allocation8 + $0x1f8] sm:$0xff]
    %v263 = vld [vmem:[#allocation8 + $0x200] sm:$0xff]
    %v264 = vld [vmem:[#allocation8 + $0x208] sm:$0xff]
    %v265 = vld [vmem:[#allocation8 + $0x210] sm:$0xff]
    %v266 = vld [vmem:[#allocation8 + $0x218] sm:$0xff]
    %v267 = vld [vmem:[#allocation8 + $0x220] sm:$0xff]
    %v268 = vld [vmem:[#allocation8 + $0x228] sm:$0xff]
    %v269 = vld [vmem:[#allocation8 + $0x230] sm:$0xff]
    %v270 = vld [vmem:[#allocation8 + $0x238] sm:$0xff]
    %v271 = vld [vmem:[#allocation8 + $0x240] sm:$0xff]
    %v272 = vld [vmem:[#allocation8 + $0x248] sm:$0xff]
    %v273 = vld [vmem:[#allocation8 + $0x250] sm:$0xff]
    %v274 = vld [vmem:[#allocation8 + $0x258] sm:$0xff]
    %v275 = vld [vmem:[#allocation8 + $0x260] sm:$0xff]
    %v276 = vld [vmem:[#allocation8 + $0x268] sm:$0xff]
    %v277 = vld [vmem:[#allocation8 + $0x270] sm:$0xff]
    %v278 = vld [vmem:[#allocation8 + $0x278] sm:$0xff]
    %v279 = vld [vmem:[#allocation8 + $0x280] sm:$0xff]
    %v280 = vld [vmem:[#allocation8 + $0x288] sm:$0xff]
    %v281 = vld [vmem:[#allocation8 + $0x290] sm:$0xff]
    %v282 = vld [vmem:[#allocation8 + $0x298] sm:$0xff]
    %v283 = vld [vmem:[#allocation8 + $0x2a0] sm:$0xff]
    %v284 = vld [vmem:[#allocation8 + $0x2a8] sm:$0xff]
    %v285 = vld [vmem:[#allocation8 + $0x2b0] sm:$0xff]
    %v286 = vld [vmem:[#allocation8 + $0x2b8] sm:$0xff]
    %v287 = vld [vmem:[#allocation8 + $0x2c0] sm:$0xff]
    %v288 = vld [vmem:[#allocation8 + $0x2c8] sm:$0xff]
    %v289 = vld [vmem:[#allocation8 + $0x2d0] sm:$0xff]
    %v290 = vld [vmem:[#allocation8 + $0x2d8] sm:$0xff]
    %v291 = vld [vmem:[#allocation8 + $0x2e0] sm:$0xff]
    %v292 = vld [vmem:[#allocation8 + $0x2e8] sm:$0xff]
    %v293 = vld [vmem:[#allocation8 + $0x2f0] sm:$0xff]
    %v294 = vld [vmem:[#allocation8 + $0x2f8] sm:$0xff]
    %v295 = vld [vmem:[#allocation8 + $0x300] sm:$0xff]
    %v296 = vld [vmem:[#allocation8 + $0x308] sm:$0xff]
    %v297 = vld [vmem:[#allocation8 + $0x310] sm:$0xff]
    %v298 = vld [vmem:[#allocation8 + $0x318] sm:$0xff]
    %v299 = vld [vmem:[#allocation8 + $0x320] sm:$0xff]
    %v300 = vld [vmem:[#allocation8 + $0x328] sm:$0xff]
    %v301 = vld [vmem:[#allocation8 + $0x330] sm:$0xff]
    %v302 = vld [vmem:[#allocation8 + $0x338] sm:$0xff]
    %v303 = vld [vmem:[#allocation8 + $0x340] sm:$0xff]
    %v304 = vld [vmem:[#allocation8 + $0x348] sm:$0xff]
    %v305 = vld [vmem:[#allocation8 + $0x350] sm:$0xff]
    %v306 = vld [vmem:[#allocation8 + $0x358] sm:$0xff]
    %v307 = vld [vmem:[#allocation8 + $0x360] sm:$0xff]
    %v308 = vld [vmem:[#allocation8 + $0x368] sm:$0xff]
    %v309 = vld [vmem:[#allocation8 + $0x370] sm:$0xff]
    %v310 = vld [vmem:[#allocation8 + $0x378] sm:$0xff]
    %v311 = vld [vmem:[#allocation8 + $0x380] sm:$0xff]
    %v312 = vld [vmem:[#allocation8 + $0x388] sm:$0xff]
    %v313 = vld [vmem:[#allocation8 + $0x390] sm:$0xff]
    %v314 = vld [vmem:[#allocation8 + $0x398] sm:$0xff]
    %v315 = vld [vmem:[#allocation8 + $0x3a0] sm:$0xff]
    %v316 = vld [vmem:[#allocation8 + $0x3a8] sm:$0xff]
    %v317 = vld [vmem:[#allocation8 + $0x3b0] sm:$0xff]
    %v318 = vld [vmem:[#allocation8 + $0x3b8] sm:$0xff]
    %v319 = vld [vmem:[#allocation8 + $0x3c0] sm:$0xff]
    %v320 = vld [vmem:[#allocation8 + $0x3c8] sm:$0xff]
    %v321 = vld [vmem:[#allocation8 + $0x3d0] sm:$0xff]
    %v322 = vld [vmem:[#allocation8 + $0x3d8] sm:$0xff]
    %v323 = vld [vmem:[#allocation8 + $0x3e0] sm:$0xff]
    %v324 = vld [vmem:[#allocation8 + $0x3e8] sm:$0xff]
    %v325 = vld [vmem:[#allocation8 + $0x3f0] sm:$0xff]
    %v326 = vld [vmem:[#allocation8 + $0x3f8] sm:$0xff]
    %v327 = vld [vmem:[%s5] sm:$0xf]
    %v329 = vlaneseq
    %v330 = vshrl.u32 %v329, 7
    %v331 = vsub.s32 0, %v330
    %v332 = vrot.slane %v327, %v331
    %v333 = vlaneseq
    %v334 = vshrl.u32 %v333, 7
    %v335 = vsub.s32 1, %v334
    %v336 = vrot.slane %v327, %v335
    %v337 = vlaneseq
    %v338 = vshrl.u32 %v337, 7
    %v339 = vsub.s32 2, %v338
    %v340 = vrot.slane %v327, %v339
    %v341 = vlaneseq
    %v342 = vshrl.u32 %v341, 7
    %v343 = vsub.s32 3, %v342
    %v344 = vrot.slane %v327, %v343
    %349 = vmatprep.subr.mxu0 %v200
    %350 = vmatpush1.msra.mxu0 %v199
    %351 = vmatprep.subr.mxu0 %v204
    %352 = vmatpush1.msra.mxu0 %v203
    %353 = vmatprep.subr.mxu0 %v208
    %354 = vmatpush1.msra.mxu0 %v207
    %355 = vmatprep.subr.mxu0 %v212
    %356 = vmatpush1.msra.mxu0 %v211
    %357 = vmatprep.subr.mxu0 %v216
    %358 = vmatpush1.msra.mxu0 %v215
    %359 = vmatprep.subr.mxu0 %v220
    %360 = vmatpush1.msra.mxu0 %v219
    %361 = vmatprep.subr.mxu0 %v224
    %362 = vmatpush1.msra.mxu0 %v223
    %363 = vmatprep.subr.mxu0 %v228
    %364 = vmatpush1.msra.mxu0 %v227
    %365 = vmatprep.subr.mxu0 %v232
    %366 = vmatpush1.msra.mxu0 %v231
    %367 = vmatprep.subr.mxu0 %v236
    %368 = vmatpush1.msra.mxu0 %v235
    %369 = vmatprep.subr.mxu0 %v240
    %370 = vmatpush1.msra.mxu0 %v239
    %371 = vmatprep.subr.mxu0 %v244
    %372 = vmatpush1.msra.mxu0 %v243
    %373 = vmatprep.subr.mxu0 %v248
    %374 = vmatpush1.msra.mxu0 %v247
    %375 = vmatprep.subr.mxu0 %v252
    %376 = vmatpush1.msra.mxu0 %v251
    %377 = vmatprep.subr.mxu0 %v256
    %378 = vmatpush1.msra.mxu0 %v255
    %379 = vmatprep.subr.mxu0 %v260
    %380 = vmatpush1.msra.mxu0 %v259
    %381 = vmatprep.subr.mxu0 %v264
    %382 = vmatpush1.msra.mxu0 %v263
    %383 = vmatprep.subr.mxu0 %v268
    %384 = vmatpush1.msra.mxu0 %v267
    %385 = vmatprep.subr.mxu0 %v272
    %386 = vmatpush1.msra.mxu0 %v271
    %387 = vmatprep.subr.mxu0 %v276
    %388 = vmatpush1.msra.mxu0 %v275
    %389 = vmatprep.subr.mxu0 %v280
    %390 = vmatpush1.msra.mxu0 %v279
    %391 = vmatprep.subr.mxu0 %v284
    %392 = vmatpush1.msra.mxu0 %v283
    %393 = vmatprep.subr.mxu0 %v288
    %394 = vmatpush1.msra.mxu0 %v287
    %395 = vmatprep.subr.mxu0 %v292
    %396 = vmatpush1.msra.mxu0 %v291
    %397 = vmatprep.subr.mxu0 %v296
    %398 = vmatpush1.msra.mxu0 %v295
    %399 = vmatprep.subr.mxu0 %v300
    %400 = vmatpush1.msra.mxu0 %v299
    %401 = vmatprep.subr.mxu0 %v304
    %402 = vmatpush1.msra.mxu0 %v303
    %403 = vmatprep.subr.mxu0 %v308
    %404 = vmatpush1.msra.mxu0 %v307
    %405 = vmatprep.subr.mxu0 %v312
    %406 = vmatpush1.msra.mxu0 %v311
    %407 = vmatprep.subr.mxu0 %v316
    %408 = vmatpush1.msra.mxu0 %v315
    %409 = vmatprep.subr.mxu0 %v320
    %410 = vmatpush1.msra.mxu0 %v319
    %411 = vmatprep.subr.mxu0 %v324
    %412 = vmatpush1.msra.mxu0 %v323
    %413 = vmatprep.mubr.f32.mxu0 %v197
    %414 = vmatmul.mubr.f32.gmra.mrb[0].mxu0 %v194
    %v415 = vpop.f32.mrb[0].mxu0
    %v416 = vadd.f32 %v332, %v415
    %v417 = vpop.f32.mrb[0].mxu0
    %v418 = vadd.f32 %v336, %v417
    %419 = vdwg.mxu0
    %420 = vmatprep.subr.mxu0 %v202
    %421 = vmatpush1.msra.mxu0 %v201
    %422 = vmatprep.subr.mxu0 %v206
    %423 = vmatpush1.msra.mxu0 %v205
    %424 = vmatprep.subr.mxu0 %v210
    %425 = vmatpush1.msra.mxu0 %v209
    %426 = vmatprep.subr.mxu0 %v214
    %427 = vmatpush1.msra.mxu0 %v213
    %428 = vmatprep.subr.mxu0 %v218
    %429 = vmatpush1.msra.mxu0 %v217
    %430 = vmatprep.subr.mxu0 %v222
    %431 = vmatpush1.msra.mxu0 %v221
    %432 = vmatprep.subr.mxu0 %v226
    %433 = vmatpush1.msra.mxu0 %v225
    %434 = vmatprep.subr.mxu0 %v230
    %435 = vmatpush1.msra.mxu0 %v229
    %436 = vmatprep.subr.mxu0 %v234
    %437 = vmatpush1.msra.mxu0 %v233
    %438 = vmatprep.subr.mxu0 %v238
    %439 = vmatpush1.msra.mxu0 %v237
    %440 = vmatprep.subr.mxu0 %v242
    %441 = vmatpush1.msra.mxu0 %v241
    %442 = vmatprep.subr.mxu0 %v246
    %443 = vmatpush1.msra.mxu0 %v245
    %444 = vmatprep.subr.mxu0 %v250
    %445 = vmatpush1.msra.mxu0 %v249
    %446 = vmatprep.subr.mxu0 %v254
    %447 = vmatpush1.msra.mxu0 %v253
    %448 = vmatprep.subr.mxu0 %v258
    %449 = vmatpush1.msra.mxu0 %v257
    %450 = vmatprep.subr.mxu0 %v262
    %451 = vmatpush1.msra.mxu0 %v261
    %452 = vmatprep.subr.mxu0 %v266
    %453 = vmatpush1.msra.mxu0 %v265
    %454 = vmatprep.subr.mxu0 %v270
    %455 = vmatpush1.msra.mxu0 %v269
    %456 = vmatprep.subr.mxu0 %v274
    %457 = vmatpush1.msra.mxu0 %v273
    %458 = vmatprep.subr.mxu0 %v278
    %459 = vmatpush1.msra.mxu0 %v277
    %460 = vmatprep.subr.mxu0 %v282
    %461 = vmatpush1.msra.mxu0 %v281
    %462 = vmatprep.subr.mxu0 %v286
    %463 = vmatpush1.msra.mxu0 %v285
    %464 = vmatprep.subr.mxu0 %v290
    %465 = vmatpush1.msra.mxu0 %v289
    %466 = vmatprep.subr.mxu0 %v294
    %467 = vmatpush1.msra.mxu0 %v293
    %468 = vmatprep.subr.mxu0 %v298
    %469 = vmatpush1.msra.mxu0 %v297
    %470 = vmatprep.subr.mxu0 %v302
    %471 = vmatpush1.msra.mxu0 %v301
    %472 = vmatprep.subr.mxu0 %v306
    %473 = vmatpush1.msra.mxu0 %v305
    %474 = vmatprep.subr.mxu0 %v310
    %475 = vmatpush1.msra.mxu0 %v309
    %476 = vmatprep.subr.mxu0 %v314
    %477 = vmatpush1.msra.mxu0 %v313
    %478 = vmatprep.subr.mxu0 %v318
    %479 = vmatpush1.msra.mxu0 %v317
    %480 = vmatprep.subr.mxu0 %v322
    %481 = vmatpush1.msra.mxu0 %v321
    %482 = vmatprep.subr.mxu0 %v326
    %483 = vmatpush1.msra.mxu0 %v325
    %484 = vmatprep.mubr.f32.mxu0 %v197
    %485 = vmatmul.mubr.f32.gmra.mrb[0].mxu0 %v194
    %v486 = vpop.f32.mrb[0].mxu0
    %v487 = vadd.f32 %v340, %v486
    %v488 = vpop.f32.mrb[0].mxu0
    %v489 = vadd.f32 %v344, %v488
    %490 = vdwg.mxu0
    %v491 = vxor.u32 %v416, 2147483648
    %v492 = vmul.f32 %v491, 1.442695
    %v493 = vpow.pop %v492
    %v494 = vadd.f32 %v493, 1.0
    %v495 = vrcp.pop %v494
    %v496 = vmul.f32 1.0, %v495
    %v497 = vxor.u32 %v418, 2147483648
    %v498 = vmul.f32 %v497, 1.442695
    %v499 = vpow.pop %v498
    %v500 = vadd.f32 %v499, 1.0
    %v501 = vrcp.pop %v500
    %v502 = vmul.f32 1.0, %v501
    %v503 = vtanh.pop %v487
    %v504 = vxor.u32 %v489, 2147483648
    %v505 = vmul.f32 %v504, 1.442695
    %v506 = vpow.pop %v505
    %v507 = vadd.f32 %v506, 1.0
    %v508 = vrcp.pop %v507
    %v509 = vmul.f32 1.0, %v508
    %v510 = vmul.f32 %v502, %v198
    %v511 = vmul.f32 %v496, %v503
    %v512 = vadd.f32 %v510, %v511
    %v513 = vtanh.pop %v512
    %v514 = vmul.f32 %v509, %v513
    %515 = vst [vmem:[#allocation12] sm:$0xff] %v514
    %516 = vst [vmem:[#allocation14] sm:$0xff] %v512
    %s517 = scalar_lea.vmem [#allocation2], 8
    %v518 = vld [vmem:[%s517] sm:$0xff]
    %s519 = scalar_lea.vmem [#allocation5], 8
    %v520 = vld [vmem:[%s519] sm:$0xff]
    %s521 = scalar_lea.vmem [#allocation8], 1024
    %v522 = vld [vmem:[%s521] sm:$0xff]
    %v523 = vld [vmem:[%s521 + $0x8] sm:$0xff]
    %v524 = vld [vmem:[%s521 + $0x10] sm:$0xff]
    %v525 = vld [vmem:[%s521 + $0x18] sm:$0xff]
    %v526 = vld [vmem:[%s521 + $0x20] sm:$0xff]
    %v527 = vld [vmem:[%s521 + $0x28] sm:$0xff]
    %v528 = vld [vmem:[%s521 + $0x30] sm:$0xff]
    %v529 = vld [vmem:[%s521 + $0x38] sm:$0xff]
    %v530 = vld [vmem:[%s521 + $0x40] sm:$0xff]
    %v531 = vld [vmem:[%s521 + $0x48] sm:$0xff]
    %v532 = vld [vmem:[%s521 + $0x50] sm:$0xff]
    %v533 = vld [vmem:[%s521 + $0x58] sm:$0xff]
    %v534 = vld [vmem:[%s521 + $0x60] sm:$0xff]
    %v535 = vld [vmem:[%s521 + $0x68] sm:$0xff]
    %v536 = vld [vmem:[%s521 + $0x70] sm:$0xff]
    %v537 = vld [vmem:[%s521 + $0x78] sm:$0xff]
    %v538 = vld [vmem:[%s521 + $0x80] sm:$0xff]
    %v539 = vld [vmem:[%s521 + $0x88] sm:$0xff]
    %v540 = vld [vmem:[%s521 + $0x90] sm:$0xff]
    %v541 = vld [vmem:[%s521 + $0x98] sm:$0xff]
    %v542 = vld [vmem:[%s521 + $0xa0] sm:$0xff]
    %v543 = vld [vmem:[%s521 + $0xa8] sm:$0xff]
    %v544 = vld [vmem:[%s521 + $0xb0] sm:$0xff]
    %v545 = vld [vmem:[%s521 + $0xb8] sm:$0xff]
    %v546 = vld [vmem:[%s521 + $0xc0] sm:$0xff]
    %v547 = vld [vmem:[%s521 + $0xc8] sm:$0xff]
    %v548 = vld [vmem:[%s521 + $0xd0] sm:$0xff]
    %v549 = vld [vmem:[%s521 + $0xd8] sm:$0xff]
    %v550 = vld [vmem:[%s521 + $0xe0] sm:$0xff]
    %v551 = vld [vmem:[%s521 + $0xe8] sm:$0xff]
    %v552 = vld [vmem:[%s521 + $0xf0] sm:$0xff]
    %v553 = vld [vmem:[%s521 + $0xf8] sm:$0xff]
    %v554 = vld [vmem:[%s521 + $0x100] sm:$0xff]
    %v555 = vld [vmem:[%s521 + $0x108] sm:$0xff]
    %v556 = vld [vmem:[%s521 + $0x110] sm:$0xff]
    %v557 = vld [vmem:[%s521 + $0x118] sm:$0xff]
    %v558 = vld [vmem:[%s521 + $0x120] sm:$0xff]
    %v559 = vld [vmem:[%s521 + $0x128] sm:$0xff]
    %v560 = vld [vmem:[%s521 + $0x130] sm:$0xff]
    %v561 = vld [vmem:[%s521 + $0x138] sm:$0xff]
    %v562 = vld [vmem:[%s521 + $0x140] sm:$0xff]
    %v563 = vld [vmem:[%s521 + $0x148] sm:$0xff]
    %v564 = vld [vmem:[%s521 + $0x150] sm:$0xff]
    %v565 = vld [vmem:[%s521 + $0x158] sm:$0xff]
    %v566 = vld [vmem:[%s521 + $0x160] sm:$0xff]
    %v567 = vld [vmem:[%s521 + $0x168] sm:$0xff]
    %v568 = vld [vmem:[%s521 + $0x170] sm:$0xff]
    %v569 = vld [vmem:[%s521 + $0x178] sm:$0xff]
    %v570 = vld [vmem:[%s521 + $0x180] sm:$0xff]
    %v571 = vld [vmem:[%s521 + $0x188] sm:$0xff]
    %v572 = vld [vmem:[%s521 + $0x190] sm:$0xff]
    %v573 = vld [vmem:[%s521 + $0x198] sm:$0xff]
    %v574 = vld [vmem:[%s521 + $0x1a0] sm:$0xff]
    %v575 = vld [vmem:[%s521 + $0x1a8] sm:$0xff]
    %v576 = vld [vmem:[%s521 + $0x1b0] sm:$0xff]
    %v577 = vld [vmem:[%s521 + $0x1b8] sm:$0xff]
    %v578 = vld [vmem:[%s521 + $0x1c0] sm:$0xff]
    %v579 = vld [vmem:[%s521 + $0x1c8] sm:$0xff]
    %v580 = vld [vmem:[%s521 + $0x1d0] sm:$0xff]
    %v581 = vld [vmem:[%s521 + $0x1d8] sm:$0xff]
    %v582 = vld [vmem:[%s521 + $0x1e0] sm:$0xff]
    %v583 = vld [vmem:[%s521 + $0x1e8] sm:$0xff]
    %v584 = vld [vmem:[%s521 + $0x1f0] sm:$0xff]
    %v585 = vld [vmem:[%s521 + $0x1f8] sm:$0xff]
    %v586 = vld [vmem:[%s521 + $0x200] sm:$0xff]
    %v587 = vld [vmem:[%s521 + $0x208] sm:$0xff]
    %v588 = vld [vmem:[%s521 + $0x210] sm:$0xff]
    %v589 = vld [vmem:[%s521 + $0x218] sm:$0xff]
    %v590 = vld [vmem:[%s521 + $0x220] sm:$0xff]
    %v591 = vld [vmem:[%s521 + $0x228] sm:$0xff]
    %v592 = vld [vmem:[%s521 + $0x230] sm:$0xff]
    %v593 = vld [vmem:[%s521 + $0x238] sm:$0xff]
    %v594 = vld [vmem:[%s521 + $0x240] sm:$0xff]
    %v595 = vld [vmem:[%s521 + $0x248] sm:$0xff]
    %v596 = vld [vmem:[%s521 + $0x250] sm:$0xff]
    %v597 = vld [vmem:[%s521 + $0x258] sm:$0xff]
    %v598 = vld [vmem:[%s521 + $0x260] sm:$0xff]
    %v599 = vld [vmem:[%s521 + $0x268] sm:$0xff]
    %v600 = vld [vmem:[%s521 + $0x270] sm:$0xff]
    %v601 = vld [vmem:[%s521 + $0x278] sm:$0xff]
    %v602 = vld [vmem:[%s521 + $0x280] sm:$0xff]
    %v603 = vld [vmem:[%s521 + $0x288] sm:$0xff]
    %v604 = vld [vmem:[%s521 + $0x290] sm:$0xff]
    %v605 = vld [vmem:[%s521 + $0x298] sm:$0xff]
    %v606 = vld [vmem:[%s521 + $0x2a0] sm:$0xff]
    %v607 = vld [vmem:[%s521 + $0x2a8] sm:$0xff]
    %v608 = vld [vmem:[%s521 + $0x2b0] sm:$0xff]
    %v609 = vld [vmem:[%s521 + $0x2b8] sm:$0xff]
    %v610 = vld [vmem:[%s521 + $0x2c0] sm:$0xff]
    %v611 = vld [vmem:[%s521 + $0x2c8] sm:$0xff]
    %v612 = vld [vmem:[%s521 + $0x2d0] sm:$0xff]
    %v613 = vld [vmem:[%s521 + $0x2d8] sm:$0xff]
    %v614 = vld [vmem:[%s521 + $0x2e0] sm:$0xff]
    %v615 = vld [vmem:[%s521 + $0x2e8] sm:$0xff]
    %v616 = vld [vmem:[%s521 + $0x2f0] sm:$0xff]
    %v617 = vld [vmem:[%s521 + $0x2f8] sm:$0xff]
    %v618 = vld [vmem:[%s521 + $0x300] sm:$0xff]
    %v619 = vld [vmem:[%s521 + $0x308] sm:$0xff]
    %v620 = vld [vmem:[%s521 + $0x310] sm:$0xff]
    %v621 = vld [vmem:[%s521 + $0x318] sm:$0xff]
    %v622 = vld [vmem:[%s521 + $0x320] sm:$0xff]
    %v623 = vld [vmem:[%s521 + $0x328] sm:$0xff]
    %v624 = vld [vmem:[%s521 + $0x330] sm:$0xff]
    %v625 = vld [vmem:[%s521 + $0x338] sm:$0xff]
    %v626 = vld [vmem:[%s521 + $0x340] sm:$0xff]
    %v627 = vld [vmem:[%s521 + $0x348] sm:$0xff]
    %v628 = vld [vmem:[%s521 + $0x350] sm:$0xff]
    %v629 = vld [vmem:[%s521 + $0x358] sm:$0xff]
    %v630 = vld [vmem:[%s521 + $0x360] sm:$0xff]
    %v631 = vld [vmem:[%s521 + $0x368] sm:$0xff]
    %v632 = vld [vmem:[%s521 + $0x370] sm:$0xff]
    %v633 = vld [vmem:[%s521 + $0x378] sm:$0xff]
    %v634 = vld [vmem:[%s521 + $0x380] sm:$0xff]
    %v635 = vld [vmem:[%s521 + $0x388] sm:$0xff]
    %v636 = vld [vmem:[%s521 + $0x390] sm:$0xff]
    %v637 = vld [vmem:[%s521 + $0x398] sm:$0xff]
    %v638 = vld [vmem:[%s521 + $0x3a0] sm:$0xff]
    %v639 = vld [vmem:[%s521 + $0x3a8] sm:$0xff]
    %v640 = vld [vmem:[%s521 + $0x3b0] sm:$0xff]
    %v641 = vld [vmem:[%s521 + $0x3b8] sm:$0xff]
    %v642 = vld [vmem:[%s521 + $0x3c0] sm:$0xff]
    %v643 = vld [vmem:[%s521 + $0x3c8] sm:$0xff]
    %v644 = vld [vmem:[%s521 + $0x3d0] sm:$0xff]
    %v645 = vld [vmem:[%s521 + $0x3d8] sm:$0xff]
    %v646 = vld [vmem:[%s521 + $0x3e0] sm:$0xff]
    %v647 = vld [vmem:[%s521 + $0x3e8] sm:$0xff]
    %v648 = vld [vmem:[%s521 + $0x3f0] sm:$0xff]
    %v649 = vld [vmem:[%s521 + $0x3f8] sm:$0xff]
    %s650 = scalar_lea.vmem %s5, 4
    %v651 = vld [vmem:[%s650] sm:$0xf]
    %v653 = vlaneseq
    %v654 = vshrl.u32 %v653, 7
    %v655 = vsub.s32 0, %v654
    %v656 = vrot.slane %v651, %v655
    %v657 = vlaneseq
    %v658 = vshrl.u32 %v657, 7
    %v659 = vsub.s32 1, %v658
    %v660 = vrot.slane %v651, %v659
    %v661 = vlaneseq
    %v662 = vshrl.u32 %v661, 7
    %v663 = vsub.s32 2, %v662
    %v664 = vrot.slane %v651, %v663
    %v665 = vlaneseq
    %v666 = vshrl.u32 %v665, 7
    %v667 = vsub.s32 3, %v666
    %v668 = vrot.slane %v651, %v667
    %673 = vmatprep.subr.mxu0 %v523
    %674 = vmatpush1.msra.mxu0 %v522
    %675 = vmatprep.subr.mxu0 %v527
    %676 = vmatpush1.msra.mxu0 %v526
    %677 = vmatprep.subr.mxu0 %v531
    %678 = vmatpush1.msra.mxu0 %v530
    %679 = vmatprep.subr.mxu0 %v535
    %680 = vmatpush1.msra.mxu0 %v534
    %681 = vmatprep.subr.mxu0 %v539
    %682 = vmatpush1.msra.mxu0 %v538
    %683 = vmatprep.subr.mxu0 %v543
    %684 = vmatpush1.msra.mxu0 %v542
    %685 = vmatprep.subr.mxu0 %v547
    %686 = vmatpush1.msra.mxu0 %v546
    %687 = vmatprep.subr.mxu0 %v551
    %688 = vmatpush1.msra.mxu0 %v550
    %689 = vmatprep.subr.mxu0 %v555
    %690 = vmatpush1.msra.mxu0 %v554
    %691 = vmatprep.subr.mxu0 %v559
    %692 = vmatpush1.msra.mxu0 %v558
    %693 = vmatprep.subr.mxu0 %v563
    %694 = vmatpush1.msra.mxu0 %v562
    %695 = vmatprep.subr.mxu0 %v567
    %696 = vmatpush1.msra.mxu0 %v566
    %697 = vmatprep.subr.mxu0 %v571
    %698 = vmatpush1.msra.mxu0 %v570
    %699 = vmatprep.subr.mxu0 %v575
    %700 = vmatpush1.msra.mxu0 %v574
    %701 = vmatprep.subr.mxu0 %v579
    %702 = vmatpush1.msra.mxu0 %v578
    %703 = vmatprep.subr.mxu0 %v583
    %704 = vmatpush1.msra.mxu0 %v582
    %705 = vmatprep.subr.mxu0 %v587
    %706 = vmatpush1.msra.mxu0 %v586
    %707 = vmatprep.subr.mxu0 %v591
    %708 = vmatpush1.msra.mxu0 %v590
    %709 = vmatprep.subr.mxu0 %v595
    %710 = vmatpush1.msra.mxu0 %v594
    %711 = vmatprep.subr.mxu0 %v599
    %712 = vmatpush1.msra.mxu0 %v598
    %713 = vmatprep.subr.mxu0 %v603
    %714 = vmatpush1.msra.mxu0 %v602
    %715 = vmatprep.subr.mxu0 %v607
    %716 = vmatpush1.msra.mxu0 %v606
    %717 = vmatprep.subr.mxu0 %v611
    %718 = vmatpush1.msra.mxu0 %v610
    %719 = vmatprep.subr.mxu0 %v615
    %720 = vmatpush1.msra.mxu0 %v614
    %721 = vmatprep.subr.mxu0 %v619
    %722 = vmatpush1.msra.mxu0 %v618
    %723 = vmatprep.subr.mxu0 %v623
    %724 = vmatpush1.msra.mxu0 %v622
    %725 = vmatprep.subr.mxu0 %v627
    %726 = vmatpush1.msra.mxu0 %v626
    %727 = vmatprep.subr.mxu0 %v631
    %728 = vmatpush1.msra.mxu0 %v630
    %729 = vmatprep.subr.mxu0 %v635
    %730 = vmatpush1.msra.mxu0 %v634
    %731 = vmatprep.subr.mxu0 %v639
    %732 = vmatpush1.msra.mxu0 %v638
    %733 = vmatprep.subr.mxu0 %v643
    %734 = vmatpush1.msra.mxu0 %v642
    %735 = vmatprep.subr.mxu0 %v647
    %736 = vmatpush1.msra.mxu0 %v646
    %737 = vmatprep.mubr.f32.mxu0 %v518
    %738 = vmatmul.mubr.f32.gmra.mrb[0].mxu0 %v514
    %v739 = vpop.f32.mrb[0].mxu0
    %v740 = vadd.f32 %v656, %v739
    %v741 = vpop.f32.mrb[0].mxu0
    %v742 = vadd.f32 %v660, %v741
    %743 = vdwg.mxu0
    %744 = vmatprep.subr.mxu0 %v525
    %745 = vmatpush1.msra.mxu0 %v524
    %746 = vmatprep.subr.mxu0 %v529
    %747 = vmatpush1.msra.mxu0 %v528
    %748 = vmatprep.subr.mxu0 %v533
    %749 = vmatpush1.msra.mxu0 %v532
    %750 = vmatprep.subr.mxu0 %v537
    %751 = vmatpush1.msra.mxu0 %v536
    %752 = vmatprep.subr.mxu0 %v541
    %753 = vmatpush1.msra.mxu0 %v540
    %754 = vmatprep.subr.mxu0 %v545
    %755 = vmatpush1.msra.mxu0 %v544
    %756 = vmatprep.subr.mxu0 %v549
    %757 = vmatpush1.msra.mxu0 %v548
    %758 = vmatprep.subr.mxu0 %v553
    %759 = vmatpush1.msra.mxu0 %v552
    %760 = vmatprep.subr.mxu0 %v557
    %761 = vmatpush1.msra.mxu0 %v556
    %762 = vmatprep.subr.mxu0 %v561
    %763 = vmatpush1.msra.mxu0 %v560
    %764 = vmatprep.subr.mxu0 %v565
    %765 = vmatpush1.msra.mxu0 %v564
    %766 = vmatprep.subr.mxu0 %v569
    %767 = vmatpush1.msra.mxu0 %v568
    %768 = vmatprep.subr.mxu0 %v573
    %769 = vmatpush1.msra.mxu0 %v572
    %770 = vmatprep.subr.mxu0 %v577
    %771 = vmatpush1.msra.mxu0 %v576
    %772 = vmatprep.subr.mxu0 %v581
    %773 = vmatpush1.msra.mxu0 %v580
    %774 = vmatprep.subr.mxu0 %v585
    %775 = vmatpush1.msra.mxu0 %v584
    %776 = vmatprep.subr.mxu0 %v589
    %777 = vmatpush1.msra.mxu0 %v588
    %778 = vmatprep.subr.mxu0 %v593
    %779 = vmatpush1.msra.mxu0 %v592
    %780 = vmatprep.subr.mxu0 %v597
    %781 = vmatpush1.msra.mxu0 %v596
    %782 = vmatprep.subr.mxu0 %v601
    %783 = vmatpush1.msra.mxu0 %v600
    %784 = vmatprep.subr.mxu0 %v605
    %785 = vmatpush1.msra.mxu0 %v604
    %786 = vmatprep.subr.mxu0 %v609
    %787 = vmatpush1.msra.mxu0 %v608
    %788 = vmatprep.subr.mxu0 %v613
    %789 = vmatpush1.msra.mxu0 %v612
    %790 = vmatprep.subr.mxu0 %v617
    %791 = vmatpush1.msra.mxu0 %v616
    %792 = vmatprep.subr.mxu0 %v621
    %793 = vmatpush1.msra.mxu0 %v620
    %794 = vmatprep.subr.mxu0 %v625
    %795 = vmatpush1.msra.mxu0 %v624
    %796 = vmatprep.subr.mxu0 %v629
    %797 = vmatpush1.msra.mxu0 %v628
    %798 = vmatprep.subr.mxu0 %v633
    %799 = vmatpush1.msra.mxu0 %v632
    %800 = vmatprep.subr.mxu0 %v637
    %801 = vmatpush1.msra.mxu0 %v636
    %802 = vmatprep.subr.mxu0 %v641
    %803 = vmatpush1.msra.mxu0 %v640
    %804 = vmatprep.subr.mxu0 %v645
    %805 = vmatpush1.msra.mxu0 %v644
    %806 = vmatprep.subr.mxu0 %v649
    %807 = vmatpush1.msra.mxu0 %v648
    %808 = vmatprep.mubr.f32.mxu0 %v518
    %809 = vmatmul.mubr.f32.gmra.mrb[0].mxu0 %v514
    %v810 = vpop.f32.mrb[0].mxu0
    %v811 = vadd.f32 %v664, %v810
    %v812 = vpop.f32.mrb[0].mxu0
    %v813 = vadd.f32 %v668, %v812
    %814 = vdwg.mxu0
    %v815 = vxor.u32 %v740, 2147483648
    %v816 = vmul.f32 %v815, 1.442695
    %v817 = vpow.pop %v816
    %v818 = vadd.f32 %v817, 1.0
    %v819 = vrcp.pop %v818
    %v820 = vmul.f32 1.0, %v819
    %v821 = vxor.u32 %v742, 2147483648
    %v822 = vmul.f32 %v821, 1.442695
    %v823 = vpow.pop %v822
    %v824 = vadd.f32 %v823, 1.0
    %v825 = vrcp.pop %v824
    %v826 = vmul.f32 1.0, %v825
    %v827 = vtanh.pop %v811
    %v828 = vxor.u32 %v813, 2147483648
    %v829 = vmul.f32 %v828, 1.442695
    %v830 = vpow.pop %v829
    %v831 = vadd.f32 %v830, 1.0
    %v832 = vrcp.pop %v831
    %v833 = vmul.f32 1.0, %v832
    %v834 = vmul.f32 %v826, %v520
    %v835 = vmul.f32 %v820, %v827
    %v836 = vadd.f32 %v834, %v835
    %v837 = vtanh.pop %v836
    %v838 = vmul.f32 %v833, %v837
    %s839 = scalar_lea.vmem [#allocation12], 8
    %840 = vst [vmem:[%s839] sm:$0xff] %v838
    %s841 = scalar_lea.vmem [#allocation14], 8
    %842 = vst [vmem:[%s841] sm:$0xff] %v836
    %v843 = vld [vmem:[#allocation10] sm:$0xff]
    %v844 = vld [vmem:[#allocation10 + $0x8] sm:$0xff]
    %v845 = vld [vmem:[#allocation10 + $0x10] sm:$0xff]
    %v846 = vld [vmem:[#allocation10 + $0x18] sm:$0xff]
    %v847 = vld [vmem:[#allocation10 + $0x20] sm:$0xff]
    %v848 = vld [vmem:[#allocation10 + $0x28] sm:$0xff]
    %v849 = vld [vmem:[#allocation10 + $0x30] sm:$0xff]
    %v850 = vld [vmem:[#allocation10 + $0x38] sm:$0xff]
    %v851 = vld [vmem:[#allocation10 + $0x40] sm:$0xff]
    %v852 = vld [vmem:[#allocation10 + $0x48] sm:$0xff]
    %v853 = vld [vmem:[#allocation10 + $0x50] sm:$0xff]
    %v854 = vld [vmem:[#allocation10 + $0x58] sm:$0xff]
    %v855 = vld [vmem:[#allocation10 + $0x60] sm:$0xff]
    %v856 = vld [vmem:[#allocation10 + $0x68] sm:$0xff]
    %v857 = vld [vmem:[#allocation10 + $0x70] sm:$0xff]
    %v858 = vld [vmem:[#allocation10 + $0x78] sm:$0xff]
    %v859 = vld [vmem:[%s7] sm:$0x1]
    %v861 = vlaneseq
    %v862 = vshrl.u32 %v861, 7
    %v863 = vsub.s32 0, %v862
    %v864 = vrot.slane %v859, %v863
    %866 = vmatprep.subr.mxu0 0.0
    %867 = vmatpush1.msra.mxu0 %v843
    %868 = vmatprep.subr.mxu0 0.0
    %869 = vmatpush1.msra.mxu0 %v844
    %870 = vmatprep.subr.mxu0 0.0
    %871 = vmatpush1.msra.mxu0 %v845
    %872 = vmatprep.subr.mxu0 0.0
    %873 = vmatpush1.msra.mxu0 %v846
    %874 = vmatprep.subr.mxu0 0.0
    %875 = vmatpush1.msra.mxu0 %v847
    %876 = vmatprep.subr.mxu0 0.0
    %877 = vmatpush1.msra.mxu0 %v848
    %878 = vmatprep.subr.mxu0 0.0
    %879 = vmatpush1.msra.mxu0 %v849
    %880 = vmatprep.subr.mxu0 0.0
    %881 = vmatpush1.msra.mxu0 %v850
    %882 = vmatprep.subr.mxu0 0.0
    %883 = vmatpush1.msra.mxu0 %v851
    %884 = vmatprep.subr.mxu0 0.0
    %885 = vmatpush1.msra.mxu0 %v852
    %886 = vmatprep.subr.mxu0 0.0
    %887 = vmatpush1.msra.mxu0 %v853
    %888 = vmatprep.subr.mxu0 0.0
    %889 = vmatpush1.msra.mxu0 %v854
    %890 = vmatprep.subr.mxu0 0.0
    %891 = vmatpush1.msra.mxu0 %v855
    %892 = vmatprep.subr.mxu0 0.0
    %893 = vmatpush1.msra.mxu0 %v856
    %894 = vmatprep.subr.mxu0 0.0
    %895 = vmatpush1.msra.mxu0 %v857
    %896 = vmatprep.subr.mxu0 0.0
    %897 = vmatpush1.msra.mxu0 %v858
    %898 = vmatprep.subr.mxu0 0.0
    %899 = vmatpush1.msra.mxu0 0.0
    %900 = vmatprep.subr.mxu0 0.0
    %901 = vmatpush1.msra.mxu0 0.0
    %902 = vmatprep.subr.mxu0 0.0
    %903 = vmatpush1.msra.mxu0 0.0
    %904 = vmatprep.subr.mxu0 0.0
    %905 = vmatpush1.msra.mxu0 0.0
    %906 = vmatprep.subr.mxu0 0.0
    %907 = vmatpush1.msra.mxu0 0.0
    %908 = vmatprep.subr.mxu0 0.0
    %909 = vmatpush1.msra.mxu0 0.0
    %910 = vmatprep.subr.mxu0 0.0
    %911 = vmatpush1.msra.mxu0 0.0
    %912 = vmatprep.subr.mxu0 0.0
    %913 = vmatpush1.msra.mxu0 0.0
    %914 = vmatprep.subr.mxu0 0.0
    %915 = vmatpush1.msra.mxu0 0.0
    %916 = vmatprep.subr.mxu0 0.0
    %917 = vmatpush1.msra.mxu0 0.0
    %918 = vmatprep.subr.mxu0 0.0
    %919 = vmatpush1.msra.mxu0 0.0
    %920 = vmatprep.subr.mxu0 0.0
    %921 = vmatpush1.msra.mxu0 0.0
    %922 = vmatprep.subr.mxu0 0.0
    %923 = vmatpush1.msra.mxu0 0.0
    %924 = vmatprep.subr.mxu0 0.0
    %925 = vmatpush1.msra.mxu0 0.0
    %926 = vmatprep.subr.mxu0 0.0
    %927 = vmatpush1.msra.mxu0 0.0
    %928 = vmatprep.subr.mxu0 0.0
    %929 = vmatpush1.msra.mxu0 0.0
    %930 = vmatprep.mubr.f32.mxu0 0.0
    %931 = vmatmul.mubr.f32.gmra.mrb[0].mxu0 %v838
    %v932 = vpop.f32.mrb[0].mxu0
    %v933 = vadd.f32 %v864, %v932
    %v934 = vpop.f32.mrb[0].mxu0
    %935 = vdwg.mxu0
    %936 = vst [vmem:[#allocation11] sm:$0xff] %v933
    // Predicated region
    $region54: #{_rnn_step_pallas.1} parent=1 // pred_check
      _
    $region55: #{_rnn_step_pallas.1} parent=1 // pred_check_branch
      %938 = sbr.rel (0) target = $region57
    $region56: #{_rnn_step_pallas.1} parent=1 // pred_region
      %s940 = ssub.s32 128, 128
      %941 = vsyncadd [#allocation4], %s940
      %s943 = sshll.u32 [#allocation11], 4
      %s944 = int_to_ptr.vmem [resolvable:$true] %s943
      %946 = dma.vmem_to_hbm [thread:$0]  %s944, 128, %s8, [#allocation4]
    $region57: #{_rnn_step_pallas.1} parent=1 // pred_fallthru
      _
    // Predicated region
    $region58: #{_rnn_step_pallas.1} parent=1 // pred_check
      _
    $region59: #{_rnn_step_pallas.1} parent=1 // pred_check_branch
      %948 = sbr.rel (0) target = $region61
    $region60: #{_rnn_step_pallas.1} parent=1 // pred_region
      %s950 = ssub.s32 256, 256
      %951 = vsyncadd [#allocation13], %s950
      %s952 = sshll.u32 [#allocation12], 4
      %s953 = int_to_ptr.vmem [resolvable:$true] %s952
      %958 = dma.vmem_to_hbm [thread:$0]  %s953, 256, %s9, [#allocation13], 128, 128, 8
    $region61: #{_rnn_step_pallas.1} parent=1 // pred_fallthru
      _
    // Predicated region
    $region62: #{_rnn_step_pallas.1} parent=1 // pred_check
      _
    $region63: #{_rnn_step_pallas.1} parent=1 // pred_check_branch
      %960 = sbr.rel (0) target = $region65
    $region64: #{_rnn_step_pallas.1} parent=1 // pred_region
      %s962 = ssub.s32 256, 256
      %963 = vsyncadd [#allocation13], %s962
      %s964 = sshll.u32 [#allocation14], 4
      %s965 = int_to_ptr.vmem [resolvable:$true] %s964
      %970 = dma.vmem_to_hbm [thread:$0]  %s965, 256, %s10, [#allocation13], 128, 128, 8
    $region65: #{_rnn_step_pallas.1} parent=1 // pred_fallthru
      _
    // Predicated region
    $region66: #{_rnn_step_pallas.1} parent=1 // pred_check
      _
    $region67: #{_rnn_step_pallas.1} parent=1 // pred_check_branch
      %972 = sbr.rel (0) target = $region69
    $region68: #{_rnn_step_pallas.1} parent=1 // pred_region
      %973 = dma.done [#allocation4], 128
    $region69: #{_rnn_step_pallas.1} parent=1 // pred_fallthru
      _
    // Predicated region
    $region70: #{_rnn_step_pallas.1} parent=1 // pred_check
      _
    $region71: #{_rnn_step_pallas.1} parent=1 // pred_check_branch
      %975 = sbr.rel (0) target = $region73
    $region72: #{_rnn_step_pallas.1} parent=1 // pred_region
      %976 = dma.done [#allocation13], 256
    $region73: #{_rnn_step_pallas.1} parent=1 // pred_fallthru
      _
    // Predicated region
    $region74: #{_rnn_step_pallas.1} parent=1 // pred_check
      _
    $region75: #{_rnn_step_pallas.1} parent=1 // pred_check_branch
      %978 = sbr.rel (0) target = $region77
    $region76: #{_rnn_step_pallas.1} parent=1 // pred_region
      %979 = dma.done [#allocation13], 256
    $region77: #{_rnn_step_pallas.1} parent=1 // pred_fallthru
      _
    %980 = vsyncpa [#allocation3], 1
    %981 = vsyncpa [#allocation6], 1
    %982 = vsyncpa [#allocation9], 1
    %983 = vsyncpa [#allocation4], 1
    %984 = vsyncpa [#allocation13], 1

</llo_original>
